<compile_context>
chip_gen: v6e
topology: v6e:2x2x1
jax: 0.10.0
libtpu: 0.0.40
codegen_flags: <defaults>
</compile_context>

<pallas_src>
import jax
import jax.numpy as jnp
from jax.experimental import pallas as pl
from jax.experimental.pallas import tpu as pltpu

# ---- problem sizes (small, consistent with the module's forward) ------------
N_SIDES = 2          # left / right eye  (combine_both_eye=True -> in_dim = 2*E)
N_VIEWS = 3          # views per side
BATCH = 4
C, H, W = 4, 16, 16
EMB_SIZE = 32        # base_net.emb_size
NUM_CLASSES = 5
DROP_RATE = 0.3      # >0 in __init__, identity at inference

# packed small-parameter buffer layout (rows; lane width = EMB_SIZE)
_BB_ROW = 0          # base_net bias row
_WFC_ROW = 8         # first row of the (col-padded) classifier weight


# =============================== kernel ======================================

def _combine_features_kernel(x_ref, mask_ref, wb_ref, small_ref, o_ref):
    """Fused forward.

    x:(S*V*B, D) f32        flattened images, row = ((s*V + v)*B + b)
    mask:(S, B, V) f32      eyes_mask
    wb:(D, E) bf16          base_net weight (cast once at prep time)
    small:(8+S*E+8, E) f32  packed [b_base | w_fc (col-padded) | b_fc]
    o:(B, num_classes) f32  logits
    """
    svb = x_ref.shape[0]
    e = wb_ref.shape[1]
    b, c = o_ref.shape
    n_sides = mask_ref.shape[0]
    n_views = mask_ref.shape[2]

    # --- base_net: relu(x @ w + b); bf16 cast in-kernel, f32 MXU accumulation
    x_bf = x_ref[...].astype(jnp.bfloat16)
    emb = jnp.dot(x_bf, wb_ref[...], preferred_element_type=jnp.float32)
    emb = jnp.maximum(emb + small_ref[_BB_ROW:_BB_ROW + 1, :], 0.0)  # (S*V*B, E)

    # --- per-side masked mean on the MXU + classifier, accumulated in regs ---
    row_i = jax.lax.broadcasted_iota(jnp.int32, (b, svb), 0)
    col_j = jax.lax.broadcasted_iota(jnp.int32, (b, svb), 1)

    bfc_row = _WFC_ROW + n_sides * e
    # init logits with the (column-padded) classifier bias
    logits = jnp.broadcast_to(small_ref[bfc_row:bfc_row + 1, :], (b, e))

    for s in range(n_sides):
        mask_s = mask_ref[s]                              # (B, V)
        n_v = jnp.sum(mask_s, axis=1, keepdims=True)      # (B, 1); 0 views -> NaN (torch parity)
        wgt_s = mask_s / n_v                              # (B, V)
        # combine matrix: comb[b, (s*V + v)*B + b] = mask[s, b, v] / n_views[s, b]
        comb = jnp.zeros((b, svb), jnp.float32)
        for v in range(n_views):
            sel = col_j == (s * n_views + v) * b + row_i  # constant-foldable 0/1 pattern
            comb = comb + jnp.where(sel, wgt_s[:, v:v + 1], 0.0)
        mean_s = jnp.dot(comb, emb, preferred_element_type=jnp.float32)      # (B, E)
        wfc_s = small_ref[_WFC_ROW + s * e:_WFC_ROW + (s + 1) * e, :]        # (E, E) col-padded
        logits = logits + jnp.dot(mean_s, wfc_s, preferred_element_type=jnp.float32)

    o_ref[...] = logits[:, 0:c]


# =============================== wrappers ====================================

def prepare_params(params):
    """One-time packing of the small static params (outside the hot path)."""
    w_base = params["w_base"]                  # (D, E) f32
    w_fc = params["w_fc"]                      # (S*E, num_classes) f32
    d, e = w_base.shape
    se, c = w_fc.shape
    s = se // e
    assert e % 8 == 0 and c <= e, "packing assumes emb_size % 8 == 0 and classes <= emb_size"

    packed = jnp.zeros((_WFC_ROW + s * e + 8, e), jnp.float32)
    packed = packed.at[_BB_ROW, :].set(params["b_base"].reshape(e))
    packed = packed.at[_WFC_ROW:_WFC_ROW + s * e, 0:c].set(w_fc)
    packed = packed.at[_WFC_ROW + s * e, 0:c].set(params["b_fc"].reshape(c))

    return {
        "w_base_bf16": w_base.astype(jnp.bfloat16),
        "packed": packed,
        "num_classes": int(c),
    }


def combine_features_forward(eyes_img, eyes_mask, prep):
    """eyes_img: (S, V, B, C, H, W) float32; eyes_mask: (S, B, V) float32."""
    S, V, B, Ci, Hi, Wi = eyes_img.shape
    D = Ci * Hi * Wi
    w_base = prep["w_base_bf16"]
    packed = prep["packed"]
    E = w_base.shape[1]
    C_out = prep["num_classes"]

    # Contiguous reshape only (no cast, no mask math): all per-call compute
    # lives inside the single pallas_call.
    x_flat = eyes_img.reshape(S * V * B, D)

    flops = (2 * (S * V * B) * D * E            # base_net matmul
             + 2 * S * B * (S * V * B) * E      # per-side combine dots
             + 2 * S * B * E * E)               # classifier dots (col-padded)
    bytes_accessed = (x_flat.size * 4 + w_base.size * 2 + packed.size * 4
                      + eyes_mask.size * 4 + B * C_out * 4)

    vmem = pltpu.MemorySpace.VMEM
    return pl.pallas_call(
        _combine_features_kernel,
        out_shape=jax.ShapeDtypeStruct((B, C_out), jnp.float32),
        in_specs=[
            pl.BlockSpec(memory_space=vmem),   # x_flat (f32, cast in kernel)
            pl.BlockSpec(memory_space=vmem),   # eyes_mask
            pl.BlockSpec(memory_space=vmem),   # w_base (bf16)
            pl.BlockSpec(memory_space=vmem),   # packed small params
        ],
        out_specs=pl.BlockSpec(memory_space=vmem),
        cost_estimate=pl.CostEstimate(flops=flops, transcendentals=0,
                                      bytes_accessed=bytes_accessed),
    )(x_flat, eyes_mask, w_base, packed)


# =========================== pure-JAX reference ==============================

def reference_forward(eyes_img, eyes_mask, params):
    """Mirrors the torch forward (same bf16-matmul / f32-acc policy as kernel).

    Note: bf16 MXU inputs drift ~1e-2 relative from a pure-f32 torch module;
    this reference applies the identical policy so the comparison is apples-
    to-apples.
    """
    S, V, B = eyes_img.shape[:3]
    x = eyes_img.reshape(S, V, B, -1).astype(jnp.bfloat16)
    wb = params["w_base"].astype(jnp.bfloat16)
    emb = jnp.maximum(
        jnp.dot(x, wb, preferred_element_type=jnp.float32) + params["b_base"],
        0.0)                                                  # (S,V,B,E)
    sides = []
    for s in range(S):
        masked = emb[s] * eyes_mask[s].T[:, :, None]          # (V,B,E)
        n = jnp.sum(eyes_mask[s], axis=1, keepdims=True)      # (B,1)
        sides.append(jnp.sum(masked, axis=0) / n)
    embedding = jnp.concatenate(sides, axis=1)                # (B, S*E)
    return embedding @ params["w_fc"] + params["b_fc"]


# ================================== main =====================================

if __name__ == "__main__":
    key = jax.random.PRNGKey(0)
    k_img, k_wb, k_bb, k_wf, k_bf = jax.random.split(key, 5)

    D = C * H * W
    params = {
        "w_base": jax.random.normal(k_wb, (D, EMB_SIZE), jnp.float32) * 0.02,
        "b_base": jax.random.normal(k_bb, (1, EMB_SIZE), jnp.float32) * 0.02,
        "w_fc": jax.random.normal(k_wf, (N_SIDES * EMB_SIZE, NUM_CLASSES),
                                  jnp.float32) * 0.1,
        "b_fc": jax.random.normal(k_bf, (1, NUM_CLASSES), jnp.float32) * 0.1,
    }
    prep = prepare_params(params)   # one-time packing, outside the hot path

    eyes_img = jax.random.normal(
        k_img, (N_SIDES, N_VIEWS, BATCH, C, H, W), jnp.float32)
    # mask: at least one real view per (side, sample) so the test has no NaNs
    eyes_mask = jnp.array(
        [[[1., 1., 0.], [1., 0., 1.], [1., 1., 1.], [0., 1., 0.]],
         [[1., 0., 0.], [1., 1., 1.], [0., 0., 1.], [1., 1., 0.]]],
        dtype=jnp.float32)                                   # (S, B, V)

    logits = jax.block_until_ready(
        combine_features_forward(eyes_img, eyes_mask, prep))
    ref = reference_forward(eyes_img, eyes_mask, params)

    assert logits.shape == (BATCH, NUM_CLASSES)
    assert jnp.allclose(logits, ref, atol=2e-3, rtol=2e-3)
    print("KERNEL_OK")
</pallas_src>

<mosaic_0001>
module attributes {stable_mosaic.version = 11 : i64} {
  func.func @_combine_features_kernel(%arg0: memref<24x1024xf32, #tpu.memory_space<vmem>>, %arg1: memref<2x4x3xf32, #tpu.memory_space<vmem>>, %arg2: memref<1024x32xbf16, #tpu.memory_space<vmem>>, %arg3: memref<80x32xf32, #tpu.memory_space<vmem>>, %arg4: memref<4x5xf32, #tpu.memory_space<vmem>>) attributes {dimension_semantics = [], scalar_prefetch = 0 : i64, scratch_operands = 0 : i64, tpu.core_type = #tpu.core_type<tc>} {
    %c0 = arith.constant 0 : index
    %c0_0 = arith.constant 0 : index
    %0 = vector.load %arg0[%c0, %c0_0] : memref<24x1024xf32, #tpu.memory_space<vmem>>, vector<24x1024xf32>
    %1 = arith.truncf %0 : vector<24x1024xf32> to vector<24x1024xbf16>
    %c0_1 = arith.constant 0 : index
    %c0_2 = arith.constant 0 : index
    %2 = vector.load %arg2[%c0_1, %c0_2] : memref<1024x32xbf16, #tpu.memory_space<vmem>>, vector<1024x32xbf16>
    %cst = arith.constant dense<0.000000e+00> : vector<24x32xf32>
    %3 = tpu.matmul %1, %2, %cst {dimension_numbers = #tpu.dot_dimension_numbers<[1], [0], [0], [1], [0, 0, 1, 1], [], []>} : vector<24x1024xbf16>, vector<1024x32xbf16>, vector<24x32xf32> -> vector<24x32xf32>
    %c0_3 = arith.constant 0 : index
    %c0_4 = arith.constant 0 : index
    %4 = vector.load %arg3[%c0_3, %c0_4] : memref<80x32xf32, #tpu.memory_space<vmem>>, vector<1x32xf32>
    %5 = vector.broadcast %4 : vector<1x32xf32> to vector<24x32xf32>
    %6 = arith.addf %3, %5 : vector<24x32xf32>
    %cst_5 = arith.constant 0.000000e+00 : f32
    %7 = vector.broadcast %cst_5 : f32 to vector<24x32xf32>
    %8 = arith.maximumf %6, %7 : vector<24x32xf32>
    %9 = tpu.iota {dimensions = array<i32: 0>} : vector<4x24xi32>
    %10 = tpu.iota {dimensions = array<i32: 1>} : vector<4x24xi32>
    %c72 = arith.constant 72 : index
    %c0_6 = arith.constant 0 : index
    %11 = vector.load %arg3[%c72, %c0_6] : memref<80x32xf32, #tpu.memory_space<vmem>>, vector<1x32xf32>
    %12 = vector.shape_cast %11 : vector<1x32xf32> to vector<1x32xf32>
    %13 = vector.broadcast %12 : vector<1x32xf32> to vector<4x32xf32>
    %c0_7 = arith.constant 0 : index
    %c0_8 = arith.constant 0 : index
    %c0_9 = arith.constant 0 : index
    %14 = vector.load %arg1[%c0_7, %c0_8, %c0_9] : memref<2x4x3xf32, #tpu.memory_space<vmem>>, vector<1x4x3xf32>
    %15 = vector.shape_cast %14 : vector<1x4x3xf32> to vector<4x3xf32>
    %cst_10 = arith.constant dense<0.000000e+00> : vector<4xf32>
    %16 = vector.multi_reduction <add>, %15, %cst_10 [1] : vector<4x3xf32> to vector<4xf32>
    %17 = vector.shape_cast %16 : vector<4xf32> to vector<4x1xf32>
    %18 = vector.broadcast %17 : vector<4x1xf32> to vector<4x3xf32>
    %19 = arith.divf %15, %18 : vector<4x3xf32>
    %cst_11 = arith.constant 0.000000e+00 : f32
    %20 = vector.broadcast %cst_11 : f32 to vector<4x24xf32>
    %c0_i32 = arith.constant 0 : i32
    %21 = vector.broadcast %c0_i32 : i32 to vector<4x24xi32>
    %22 = arith.addi %21, %9 : vector<4x24xi32>
    %23 = arith.cmpi eq, %10, %22 : vector<4x24xi32>
    %24 = vector.extract_strided_slice %19 {offsets = [0, 0], sizes = [4, 1], strides = [1, 1]} : vector<4x3xf32> to vector<4x1xf32>
    %cst_12 = arith.constant 0.000000e+00 : f32
    %25 = vector.shape_cast %24 : vector<4x1xf32> to vector<4x1xf32>
    %26 = vector.broadcast %25 : vector<4x1xf32> to vector<4x24xf32>
    %27 = vector.broadcast %cst_12 : f32 to vector<4x24xf32>
    %28 = arith.select %23, %26, %27 : vector<4x24xi1>, vector<4x24xf32>
    %29 = arith.addf %20, %28 : vector<4x24xf32>
    %c4_i32 = arith.constant 4 : i32
    %30 = vector.broadcast %c4_i32 : i32 to vector<4x24xi32>
    %31 = arith.addi %30, %9 : vector<4x24xi32>
    %32 = arith.cmpi eq, %10, %31 : vector<4x24xi32>
    %33 = vector.extract_strided_slice %19 {offsets = [0, 1], sizes = [4, 1], strides = [1, 1]} : vector<4x3xf32> to vector<4x1xf32>
    %cst_13 = arith.constant 0.000000e+00 : f32
    %34 = vector.shape_cast %33 : vector<4x1xf32> to vector<4x1xf32>
    %35 = vector.broadcast %34 : vector<4x1xf32> to vector<4x24xf32>
    %36 = vector.broadcast %cst_13 : f32 to vector<4x24xf32>
    %37 = arith.select %32, %35, %36 : vector<4x24xi1>, vector<4x24xf32>
    %38 = arith.addf %29, %37 : vector<4x24xf32>
    %c8_i32 = arith.constant 8 : i32
    %39 = vector.broadcast %c8_i32 : i32 to vector<4x24xi32>
    %40 = arith.addi %39, %9 : vector<4x24xi32>
    %41 = arith.cmpi eq, %10, %40 : vector<4x24xi32>
    %42 = vector.extract_strided_slice %19 {offsets = [0, 2], sizes = [4, 1], strides = [1, 1]} : vector<4x3xf32> to vector<4x1xf32>
    %cst_14 = arith.constant 0.000000e+00 : f32
    %43 = vector.shape_cast %42 : vector<4x1xf32> to vector<4x1xf32>
    %44 = vector.broadcast %43 : vector<4x1xf32> to vector<4x24xf32>
    %45 = vector.broadcast %cst_14 : f32 to vector<4x24xf32>
    %46 = arith.select %41, %44, %45 : vector<4x24xi1>, vector<4x24xf32>
    %47 = arith.addf %38, %46 : vector<4x24xf32>
    %cst_15 = arith.constant dense<0.000000e+00> : vector<4x32xf32>
    %48 = tpu.matmul %47, %8, %cst_15 {dimension_numbers = #tpu.dot_dimension_numbers<[1], [0], [0], [1], [0, 0, 1, 1], [], []>} : vector<4x24xf32>, vector<24x32xf32>, vector<4x32xf32> -> vector<4x32xf32>
    %c8 = arith.constant 8 : index
    %c0_16 = arith.constant 0 : index
    %49 = vector.load %arg3[%c8, %c0_16] : memref<80x32xf32, #tpu.memory_space<vmem>>, vector<32x32xf32>
    %cst_17 = arith.constant dense<0.000000e+00> : vector<4x32xf32>
    %50 = tpu.matmul %48, %49, %cst_17 {dimension_numbers = #tpu.dot_dimension_numbers<[1], [0], [0], [1], [0, 0, 1, 1], [], []>} : vector<4x32xf32>, vector<32x32xf32>, vector<4x32xf32> -> vector<4x32xf32>
    %51 = arith.addf %13, %50 : vector<4x32xf32>
    %c1 = arith.constant 1 : index
    %c0_18 = arith.constant 0 : index
    %c0_19 = arith.constant 0 : index
    %52 = vector.load %arg1[%c1, %c0_18, %c0_19] : memref<2x4x3xf32, #tpu.memory_space<vmem>>, vector<1x4x3xf32>
    %53 = vector.shape_cast %52 : vector<1x4x3xf32> to vector<4x3xf32>
    %cst_20 = arith.constant dense<0.000000e+00> : vector<4xf32>
    %54 = vector.multi_reduction <add>, %53, %cst_20 [1] : vector<4x3xf32> to vector<4xf32>
    %55 = vector.shape_cast %54 : vector<4xf32> to vector<4x1xf32>
    %56 = vector.broadcast %55 : vector<4x1xf32> to vector<4x3xf32>
    %57 = arith.divf %53, %56 : vector<4x3xf32>
    %cst_21 = arith.constant 0.000000e+00 : f32
    %58 = vector.broadcast %cst_21 : f32 to vector<4x24xf32>
    %c12_i32 = arith.constant 12 : i32
    %59 = vector.broadcast %c12_i32 : i32 to vector<4x24xi32>
    %60 = arith.addi %59, %9 : vector<4x24xi32>
    %61 = arith.cmpi eq, %10, %60 : vector<4x24xi32>
    %62 = vector.extract_strided_slice %57 {offsets = [0, 0], sizes = [4, 1], strides = [1, 1]} : vector<4x3xf32> to vector<4x1xf32>
    %cst_22 = arith.constant 0.000000e+00 : f32
    %63 = vector.shape_cast %62 : vector<4x1xf32> to vector<4x1xf32>
    %64 = vector.broadcast %63 : vector<4x1xf32> to vector<4x24xf32>
    %65 = vector.broadcast %cst_22 : f32 to vector<4x24xf32>
    %66 = arith.select %61, %64, %65 : vector<4x24xi1>, vector<4x24xf32>
    %67 = arith.addf %58, %66 : vector<4x24xf32>
    %c16_i32 = arith.constant 16 : i32
    %68 = vector.broadcast %c16_i32 : i32 to vector<4x24xi32>
    %69 = arith.addi %68, %9 : vector<4x24xi32>
    %70 = arith.cmpi eq, %10, %69 : vector<4x24xi32>
    %71 = vector.extract_strided_slice %57 {offsets = [0, 1], sizes = [4, 1], strides = [1, 1]} : vector<4x3xf32> to vector<4x1xf32>
    %cst_23 = arith.constant 0.000000e+00 : f32
    %72 = vector.shape_cast %71 : vector<4x1xf32> to vector<4x1xf32>
    %73 = vector.broadcast %72 : vector<4x1xf32> to vector<4x24xf32>
    %74 = vector.broadcast %cst_23 : f32 to vector<4x24xf32>
    %75 = arith.select %70, %73, %74 : vector<4x24xi1>, vector<4x24xf32>
    %76 = arith.addf %67, %75 : vector<4x24xf32>
    %c20_i32 = arith.constant 20 : i32
    %77 = vector.broadcast %c20_i32 : i32 to vector<4x24xi32>
    %78 = arith.addi %77, %9 : vector<4x24xi32>
    %79 = arith.cmpi eq, %10, %78 : vector<4x24xi32>
    %80 = vector.extract_strided_slice %57 {offsets = [0, 2], sizes = [4, 1], strides = [1, 1]} : vector<4x3xf32> to vector<4x1xf32>
    %cst_24 = arith.constant 0.000000e+00 : f32
    %81 = vector.shape_cast %80 : vector<4x1xf32> to vector<4x1xf32>
    %82 = vector.broadcast %81 : vector<4x1xf32> to vector<4x24xf32>
    %83 = vector.broadcast %cst_24 : f32 to vector<4x24xf32>
    %84 = arith.select %79, %82, %83 : vector<4x24xi1>, vector<4x24xf32>
    %85 = arith.addf %76, %84 : vector<4x24xf32>
    %cst_25 = arith.constant dense<0.000000e+00> : vector<4x32xf32>
    %86 = tpu.matmul %85, %8, %cst_25 {dimension_numbers = #tpu.dot_dimension_numbers<[1], [0], [0], [1], [0, 0, 1, 1], [], []>} : vector<4x24xf32>, vector<24x32xf32>, vector<4x32xf32> -> vector<4x32xf32>
    %c40 = arith.constant 40 : index
    %c0_26 = arith.constant 0 : index
    %87 = vector.load %arg3[%c40, %c0_26] : memref<80x32xf32, #tpu.memory_space<vmem>>, vector<32x32xf32>
    %cst_27 = arith.constant dense<0.000000e+00> : vector<4x32xf32>
    %88 = tpu.matmul %86, %87, %cst_27 {dimension_numbers = #tpu.dot_dimension_numbers<[1], [0], [0], [1], [0, 0, 1, 1], [], []>} : vector<4x32xf32>, vector<32x32xf32>, vector<4x32xf32> -> vector<4x32xf32>
    %89 = arith.addf %51, %88 : vector<4x32xf32>
    %90 = vector.extract_strided_slice %89 {offsets = [0, 0], sizes = [4, 5], strides = [1, 1]} : vector<4x32xf32> to vector<4x5xf32>
    %c0_28 = arith.constant 0 : index
    %c0_29 = arith.constant 0 : index
    %91 = vector.load %arg4[%c0_28, %c0_29] : memref<4x5xf32, #tpu.memory_space<vmem>>, vector<4x5xf32>
    tpu.vector_store %arg4[%c0_28, %c0_29], %90 {strides = array<i32>} : memref<4x5xf32, #tpu.memory_space<vmem>>, vector<4x5xf32>,
    return
  }
}

</mosaic_0001>

<llo_original>
// kernel: tpu_custom_call.1
$region0: #{tpu_custom_call.1}
  #allocation0 [shape = 'u32[]', space=smem, size = 0x4, offset = 0x4, fixed_abs, tag = 'smem constant byte address 0x4 - core index']
  #allocation1 [shape = 'u32[144,128]{1,0:T(1,128)}', space=vmem, size = 0x12000, scoped, tag = 'internal scratch']
  %s0 = inlined_call_operand.vmem [shape: f32[24,1024], index: 0, kind: input, shape index: {}]
  %s1 = inlined_call_operand.vmem [shape: f32[2,4,3], index: 1, kind: input, shape index: {}]
  %s2 = inlined_call_operand.vmem [shape: bf16[1024,32], index: 2, kind: input, shape index: {}]
  %s3 = inlined_call_operand.vmem [shape: f32[80,32], index: 3, kind: input, shape index: {}]
  %s4 = inlined_call_operand.hbm [shape: f32[4,5], index: 4, kind: output, shape index: {}]
  %s5 = sld [smem:[#allocation0]]
  $region26: #{tpu_custom_call.1} parent=0
    _
  %s7 = ssub.s32 1, %s5
  %s8 = scalar_select 0, %s7, %s5
  $region1: #{tpu_custom_call.1} parent=0
    #allocation2 [shape = 'u8[2048]{0}', space=vmem, size = 0x800, scoped, tag = 'output window, operand 0, single buffered']
    #allocation3 [shape = 's32[1]{0}', space=sflag, size = 0x4, scoped, tag = 'scoped memory for tpu_custom_call.1']
    %9 = vsyncpa [#allocation3], 0
    // Predicated region
    $region2: #{tpu_custom_call.1} parent=1 // pred_check
      _
    $region3: #{tpu_custom_call.1} parent=1 // pred_check_branch
      %11 = sbr.rel (0) target = $region5
    $region4: #{tpu_custom_call.1} parent=1 // pred_region
      _
    $region5: #{tpu_custom_call.1} parent=1 // pred_fallthru
      _
    // Predicated region
    $region6: #{tpu_custom_call.1} parent=1 // pred_check
      _
    $region7: #{tpu_custom_call.1} parent=1 // pred_check_branch
      %13 = sbr.rel (0) target = $region9
    $region8: #{tpu_custom_call.1} parent=1 // pred_region
      _
    $region9: #{tpu_custom_call.1} parent=1 // pred_fallthru
      _
    // Predicated region
    $region10: #{tpu_custom_call.1} parent=1 // pred_check
      _
    $region11: #{tpu_custom_call.1} parent=1 // pred_check_branch
      %15 = sbr.rel (0) target = $region13
    $region12: #{tpu_custom_call.1} parent=1 // pred_region
      _
    $region13: #{tpu_custom_call.1} parent=1 // pred_fallthru
      _
    // Predicated region
    $region14: #{tpu_custom_call.1} parent=1 // pred_check
      _
    $region15: #{tpu_custom_call.1} parent=1 // pred_check_branch
      %17 = sbr.rel (0) target = $region17
    $region16: #{tpu_custom_call.1} parent=1 // pred_region
      _
    $region17: #{tpu_custom_call.1} parent=1 // pred_fallthru
      _
    %v19 = vld [vmem:[%s0] sm:$0xff]
    %v20 = vld [vmem:[%s0 + $0x8] sm:$0xff]
    %v21 = vld [vmem:[%s0 + $0x10] sm:$0xff]
    %v22 = vld [vmem:[%s0 + $0x18] sm:$0xff]
    %v23 = vld [vmem:[%s0 + $0x20] sm:$0xff]
    %v24 = vld [vmem:[%s0 + $0x28] sm:$0xff]
    %v25 = vld [vmem:[%s0 + $0x30] sm:$0xff]
    %v26 = vld [vmem:[%s0 + $0x38] sm:$0xff]
    %v27 = vld [vmem:[%s0 + $0x40] sm:$0xff]
    %v28 = vld [vmem:[%s0 + $0x48] sm:$0xff]
    %v29 = vld [vmem:[%s0 + $0x50] sm:$0xff]
    %v30 = vld [vmem:[%s0 + $0x58] sm:$0xff]
    %v31 = vld [vmem:[%s0 + $0x60] sm:$0xff]
    %v32 = vld [vmem:[%s0 + $0x68] sm:$0xff]
    %v33 = vld [vmem:[%s0 + $0x70] sm:$0xff]
    %v34 = vld [vmem:[%s0 + $0x78] sm:$0xff]
    %v35 = vld [vmem:[%s0 + $0x80] sm:$0xff]
    %v36 = vld [vmem:[%s0 + $0x88] sm:$0xff]
    %v37 = vld [vmem:[%s0 + $0x90] sm:$0xff]
    %v38 = vld [vmem:[%s0 + $0x98] sm:$0xff]
    %v39 = vld [vmem:[%s0 + $0xa0] sm:$0xff]
    %v40 = vld [vmem:[%s0 + $0xa8] sm:$0xff]
    %v41 = vld [vmem:[%s0 + $0xb0] sm:$0xff]
    %v42 = vld [vmem:[%s0 + $0xb8] sm:$0xff]
    %v43 = vpack.c.bf16 %v27, %v19
    %v44 = vpack.c.bf16 %v28, %v20
    %v45 = vpack.c.bf16 %v29, %v21
    %v46 = vpack.c.bf16 %v30, %v22
    %v47 = vpack.c.bf16 %v31, %v23
    %v48 = vpack.c.bf16 %v32, %v24
    %v49 = vpack.c.bf16 %v33, %v25
    %v50 = vpack.c.bf16 %v34, %v26
    %v51 = vpack.c.bf16 %v35, %v35
    %v52 = vpack.c.bf16 %v36, %v36
    %v53 = vpack.c.bf16 %v37, %v37
    %v54 = vpack.c.bf16 %v38, %v38
    %v55 = vpack.c.bf16 %v39, %v39
    %v56 = vpack.c.bf16 %v40, %v40
    %v57 = vpack.c.bf16 %v41, %v41
    %v58 = vpack.c.bf16 %v42, %v42
    %v59 = vld [vmem:[%s2] sm:$0xf]
    %v60 = vld [vmem:[%s2 + $0x4] sm:$0xf]
    %v61 = vld [vmem:[%s2 + $0x8] sm:$0xf]
    %v62 = vld [vmem:[%s2 + $0xc] sm:$0xf]
    %v63 = vld [vmem:[%s2 + $0x10] sm:$0xf]
    %v64 = vld [vmem:[%s2 + $0x14] sm:$0xf]
    %v65 = vld [vmem:[%s2 + $0x18] sm:$0xf]
    %v66 = vld [vmem:[%s2 + $0x1c] sm:$0xf]
    %v67 = vld [vmem:[%s2 + $0x20] sm:$0xf]
    %v68 = vld [vmem:[%s2 + $0x24] sm:$0xf]
    %v69 = vld [vmem:[%s2 + $0x28] sm:$0xf]
    %v70 = vld [vmem:[%s2 + $0x2c] sm:$0xf]
    %v71 = vld [vmem:[%s2 + $0x30] sm:$0xf]
    %v72 = vld [vmem:[%s2 + $0x34] sm:$0xf]
    %v73 = vld [vmem:[%s2 + $0x38] sm:$0xf]
    %v74 = vld [vmem:[%s2 + $0x3c] sm:$0xf]
    %v75 = vld [vmem:[%s2 + $0x40] sm:$0xf]
    %v76 = vld [vmem:[%s2 + $0x44] sm:$0xf]
    %v77 = vld [vmem:[%s2 + $0x48] sm:$0xf]
    %v78 = vld [vmem:[%s2 + $0x4c] sm:$0xf]
    %v79 = vld [vmem:[%s2 + $0x50] sm:$0xf]
    %v80 = vld [vmem:[%s2 + $0x54] sm:$0xf]
    %v81 = vld [vmem:[%s2 + $0x58] sm:$0xf]
    %v82 = vld [vmem:[%s2 + $0x5c] sm:$0xf]
    %v83 = vld [vmem:[%s2 + $0x60] sm:$0xf]
    %v84 = vld [vmem:[%s2 + $0x64] sm:$0xf]
    %v85 = vld [vmem:[%s2 + $0x68] sm:$0xf]
    %v86 = vld [vmem:[%s2 + $0x6c] sm:$0xf]
    %v87 = vld [vmem:[%s2 + $0x70] sm:$0xf]
    %v88 = vld [vmem:[%s2 + $0x74] sm:$0xf]
    %v89 = vld [vmem:[%s2 + $0x78] sm:$0xf]
    %v90 = vld [vmem:[%s2 + $0x7c] sm:$0xf]
    %v91 = vld [vmem:[%s2 + $0x80] sm:$0xf]
    %v92 = vld [vmem:[%s2 + $0x84] sm:$0xf]
    %v93 = vld [vmem:[%s2 + $0x88] sm:$0xf]
    %v94 = vld [vmem:[%s2 + $0x8c] sm:$0xf]
    %v95 = vld [vmem:[%s2 + $0x90] sm:$0xf]
    %v96 = vld [vmem:[%s2 + $0x94] sm:$0xf]
    %v97 = vld [vmem:[%s2 + $0x98] sm:$0xf]
    %v98 = vld [vmem:[%s2 + $0x9c] sm:$0xf]
    %v99 = vld [vmem:[%s2 + $0xa0] sm:$0xf]
    %v100 = vld [vmem:[%s2 + $0xa4] sm:$0xf]
    %v101 = vld [vmem:[%s2 + $0xa8] sm:$0xf]
    %v102 = vld [vmem:[%s2 + $0xac] sm:$0xf]
    %v103 = vld [vmem:[%s2 + $0xb0] sm:$0xf]
    %v104 = vld [vmem:[%s2 + $0xb4] sm:$0xf]
    %v105 = vld [vmem:[%s2 + $0xb8] sm:$0xf]
    %v106 = vld [vmem:[%s2 + $0xbc] sm:$0xf]
    %v107 = vld [vmem:[%s2 + $0xc0] sm:$0xf]
    %v108 = vld [vmem:[%s2 + $0xc4] sm:$0xf]
    %v109 = vld [vmem:[%s2 + $0xc8] sm:$0xf]
    %v110 = vld [vmem:[%s2 + $0xcc] sm:$0xf]
    %v111 = vld [vmem:[%s2 + $0xd0] sm:$0xf]
    %v112 = vld [vmem:[%s2 + $0xd4] sm:$0xf]
    %v113 = vld [vmem:[%s2 + $0xd8] sm:$0xf]
    %v114 = vld [vmem:[%s2 + $0xdc] sm:$0xf]
    %v115 = vld [vmem:[%s2 + $0xe0] sm:$0xf]
    %v116 = vld [vmem:[%s2 + $0xe4] sm:$0xf]
    %v117 = vld [vmem:[%s2 + $0xe8] sm:$0xf]
    %v118 = vld [vmem:[%s2 + $0xec] sm:$0xf]
    %v119 = vld [vmem:[%s2 + $0xf0] sm:$0xf]
    %v120 = vld [vmem:[%s2 + $0xf4] sm:$0xf]
    %v121 = vld [vmem:[%s2 + $0xf8] sm:$0xf]
    %v122 = vld [vmem:[%s2 + $0xfc] sm:$0xf]
    %v123 = vld [vmem:[%s2 + $0x100] sm:$0xf]
    %v124 = vld [vmem:[%s2 + $0x104] sm:$0xf]
    %v125 = vld [vmem:[%s2 + $0x108] sm:$0xf]
    %v126 = vld [vmem:[%s2 + $0x10c] sm:$0xf]
    %v127 = vld [vmem:[%s2 + $0x110] sm:$0xf]
    %v128 = vld [vmem:[%s2 + $0x114] sm:$0xf]
    %v129 = vld [vmem:[%s2 + $0x118] sm:$0xf]
    %v130 = vld [vmem:[%s2 + $0x11c] sm:$0xf]
    %v131 = vld [vmem:[%s2 + $0x120] sm:$0xf]
    %v132 = vld [vmem:[%s2 + $0x124] sm:$0xf]
    %v133 = vld [vmem:[%s2 + $0x128] sm:$0xf]
    %v134 = vld [vmem:[%s2 + $0x12c] sm:$0xf]
    %v135 = vld [vmem:[%s2 + $0x130] sm:$0xf]
    %v136 = vld [vmem:[%s2 + $0x134] sm:$0xf]
    %v137 = vld [vmem:[%s2 + $0x138] sm:$0xf]
    %v138 = vld [vmem:[%s2 + $0x13c] sm:$0xf]
    %v139 = vld [vmem:[%s2 + $0x140] sm:$0xf]
    %v140 = vld [vmem:[%s2 + $0x144] sm:$0xf]
    %v141 = vld [vmem:[%s2 + $0x148] sm:$0xf]
    %v142 = vld [vmem:[%s2 + $0x14c] sm:$0xf]
    %v143 = vld [vmem:[%s2 + $0x150] sm:$0xf]
    %v144 = vld [vmem:[%s2 + $0x154] sm:$0xf]
    %v145 = vld [vmem:[%s2 + $0x158] sm:$0xf]
    %v146 = vld [vmem:[%s2 + $0x15c] sm:$0xf]
    %v147 = vld [vmem:[%s2 + $0x160] sm:$0xf]
    %v148 = vld [vmem:[%s2 + $0x164] sm:$0xf]
    %v149 = vld [vmem:[%s2 + $0x168] sm:$0xf]
    %v150 = vld [vmem:[%s2 + $0x16c] sm:$0xf]
    %v151 = vld [vmem:[%s2 + $0x170] sm:$0xf]
    %v152 = vld [vmem:[%s2 + $0x174] sm:$0xf]
    %v153 = vld [vmem:[%s2 + $0x178] sm:$0xf]
    %v154 = vld [vmem:[%s2 + $0x17c] sm:$0xf]
    %v155 = vld [vmem:[%s2 + $0x180] sm:$0xf]
    %v156 = vld [vmem:[%s2 + $0x184] sm:$0xf]
    %v157 = vld [vmem:[%s2 + $0x188] sm:$0xf]
    %v158 = vld [vmem:[%s2 + $0x18c] sm:$0xf]
    %v159 = vld [vmem:[%s2 + $0x190] sm:$0xf]
    %v160 = vld [vmem:[%s2 + $0x194] sm:$0xf]
    %v161 = vld [vmem:[%s2 + $0x198] sm:$0xf]
    %v162 = vld [vmem:[%s2 + $0x19c] sm:$0xf]
    %v163 = vld [vmem:[%s2 + $0x1a0] sm:$0xf]
    %v164 = vld [vmem:[%s2 + $0x1a4] sm:$0xf]
    %v165 = vld [vmem:[%s2 + $0x1a8] sm:$0xf]
    %v166 = vld [vmem:[%s2 + $0x1ac] sm:$0xf]
    %v167 = vld [vmem:[%s2 + $0x1b0] sm:$0xf]
    %v168 = vld [vmem:[%s2 + $0x1b4] sm:$0xf]
    %v169 = vld [vmem:[%s2 + $0x1b8] sm:$0xf]
    %v170 = vld [vmem:[%s2 + $0x1bc] sm:$0xf]
    %v171 = vld [vmem:[%s2 + $0x1c0] sm:$0xf]
    %v172 = vld [vmem:[%s2 + $0x1c4] sm:$0xf]
    %v173 = vld [vmem:[%s2 + $0x1c8] sm:$0xf]
    %v174 = vld [vmem:[%s2 + $0x1cc] sm:$0xf]
    %v175 = vld [vmem:[%s2 + $0x1d0] sm:$0xf]
    %v176 = vld [vmem:[%s2 + $0x1d4] sm:$0xf]
    %v177 = vld [vmem:[%s2 + $0x1d8] sm:$0xf]
    %v178 = vld [vmem:[%s2 + $0x1dc] sm:$0xf]
    %v179 = vld [vmem:[%s2 + $0x1e0] sm:$0xf]
    %v180 = vld [vmem:[%s2 + $0x1e4] sm:$0xf]
    %v181 = vld [vmem:[%s2 + $0x1e8] sm:$0xf]
    %v182 = vld [vmem:[%s2 + $0x1ec] sm:$0xf]
    %v183 = vld [vmem:[%s2 + $0x1f0] sm:$0xf]
    %v184 = vld [vmem:[%s2 + $0x1f4] sm:$0xf]
    %v185 = vld [vmem:[%s2 + $0x1f8] sm:$0xf]
    %v186 = vld [vmem:[%s2 + $0x1fc] sm:$0xf]
    %v187 = vld [vmem:[%s3] sm:$0x1]
    %v188 = vlaneseq
    %v189 = vshrl.u32 %v188, 7
    %v190 = vsub.s32 0, %v189
    %v191 = vrot.slane %v187, %v190
    %v320 = vunpack.c.l.b16 %v59
    %v321 = vunpack.c.l.b16 %v60
    %v322 = vunpack.c.l.b16 %v61
    %v323 = vunpack.c.l.b16 %v62
    %v324 = vunpack.c.l.b16 %v63
    %v325 = vunpack.c.l.b16 %v64
    %v326 = vunpack.c.l.b16 %v65
    %v327 = vunpack.c.l.b16 %v66
    %v328 = vunpack.c.l.b16 %v67
    %v329 = vunpack.c.l.b16 %v68
    %v330 = vunpack.c.l.b16 %v69
    %v331 = vunpack.c.l.b16 %v70
    %v332 = vunpack.c.l.b16 %v71
    %v333 = vunpack.c.l.b16 %v72
    %v334 = vunpack.c.l.b16 %v73
    %v335 = vunpack.c.l.b16 %v74
    %v336 = vunpack.c.l.b16 %v75
    %v337 = vunpack.c.l.b16 %v76
    %v338 = vunpack.c.l.b16 %v77
    %v339 = vunpack.c.l.b16 %v78
    %v340 = vunpack.c.l.b16 %v79
    %v341 = vunpack.c.l.b16 %v80
    %v342 = vunpack.c.l.b16 %v81
    %v343 = vunpack.c.l.b16 %v82
    %v344 = vunpack.c.l.b16 %v83
    %v345 = vunpack.c.l.b16 %v84
    %v346 = vunpack.c.l.b16 %v85
    %v347 = vunpack.c.l.b16 %v86
    %v348 = vunpack.c.l.b16 %v87
    %v349 = vunpack.c.l.b16 %v88
    %v350 = vunpack.c.l.b16 %v89
    %v351 = vunpack.c.l.b16 %v90
    %v352 = vunpack.c.l.b16 %v91
    %v353 = vunpack.c.l.b16 %v92
    %v354 = vunpack.c.l.b16 %v93
    %v355 = vunpack.c.l.b16 %v94
    %v356 = vunpack.c.l.b16 %v95
    %v357 = vunpack.c.l.b16 %v96
    %v358 = vunpack.c.l.b16 %v97
    %v359 = vunpack.c.l.b16 %v98
    %v360 = vunpack.c.l.b16 %v99
    %v361 = vunpack.c.l.b16 %v100
    %v362 = vunpack.c.l.b16 %v101
    %v363 = vunpack.c.l.b16 %v102
    %v364 = vunpack.c.l.b16 %v103
    %v365 = vunpack.c.l.b16 %v104
    %v366 = vunpack.c.l.b16 %v105
    %v367 = vunpack.c.l.b16 %v106
    %v368 = vunpack.c.l.b16 %v107
    %v369 = vunpack.c.l.b16 %v108
    %v370 = vunpack.c.l.b16 %v109
    %v371 = vunpack.c.l.b16 %v110
    %v372 = vunpack.c.l.b16 %v111
    %v373 = vunpack.c.l.b16 %v112
    %v374 = vunpack.c.l.b16 %v113
    %v375 = vunpack.c.l.b16 %v114
    %v376 = vunpack.c.l.b16 %v115
    %v377 = vunpack.c.l.b16 %v116
    %v378 = vunpack.c.l.b16 %v117
    %v379 = vunpack.c.l.b16 %v118
    %v380 = vunpack.c.l.b16 %v119
    %v381 = vunpack.c.l.b16 %v120
    %v382 = vunpack.c.l.b16 %v121
    %v383 = vunpack.c.l.b16 %v122
    %v384 = vunpack.c.l.b16 %v123
    %v385 = vunpack.c.l.b16 %v124
    %v386 = vunpack.c.l.b16 %v125
    %v387 = vunpack.c.l.b16 %v126
    %v388 = vunpack.c.l.b16 %v127
    %v389 = vunpack.c.l.b16 %v128
    %v390 = vunpack.c.l.b16 %v129
    %v391 = vunpack.c.l.b16 %v130
    %v392 = vunpack.c.l.b16 %v131
    %v393 = vunpack.c.l.b16 %v132
    %v394 = vunpack.c.l.b16 %v133
    %v395 = vunpack.c.l.b16 %v134
    %v396 = vunpack.c.l.b16 %v135
    %v397 = vunpack.c.l.b16 %v136
    %v398 = vunpack.c.l.b16 %v137
    %v399 = vunpack.c.l.b16 %v138
    %v400 = vunpack.c.l.b16 %v139
    %v401 = vunpack.c.l.b16 %v140
    %v402 = vunpack.c.l.b16 %v141
    %v403 = vunpack.c.l.b16 %v142
    %v404 = vunpack.c.l.b16 %v143
    %v405 = vunpack.c.l.b16 %v144
    %v406 = vunpack.c.l.b16 %v145
    %v407 = vunpack.c.l.b16 %v146
    %v408 = vunpack.c.l.b16 %v147
    %v409 = vunpack.c.l.b16 %v148
    %v410 = vunpack.c.l.b16 %v149
    %v411 = vunpack.c.l.b16 %v150
    %v412 = vunpack.c.l.b16 %v151
    %v413 = vunpack.c.l.b16 %v152
    %v414 = vunpack.c.l.b16 %v153
    %v415 = vunpack.c.l.b16 %v154
    %v416 = vunpack.c.l.b16 %v155
    %v417 = vunpack.c.l.b16 %v156
    %v418 = vunpack.c.l.b16 %v157
    %v419 = vunpack.c.l.b16 %v158
    %v420 = vunpack.c.l.b16 %v159
    %v421 = vunpack.c.l.b16 %v160
    %v422 = vunpack.c.l.b16 %v161
    %v423 = vunpack.c.l.b16 %v162
    %v424 = vunpack.c.l.b16 %v163
    %v425 = vunpack.c.l.b16 %v164
    %v426 = vunpack.c.l.b16 %v165
    %v427 = vunpack.c.l.b16 %v166
    %v428 = vunpack.c.l.b16 %v167
    %v429 = vunpack.c.l.b16 %v168
    %v430 = vunpack.c.l.b16 %v169
    %v431 = vunpack.c.l.b16 %v170
    %v432 = vunpack.c.l.b16 %v171
    %v433 = vunpack.c.l.b16 %v172
    %v434 = vunpack.c.l.b16 %v173
    %v435 = vunpack.c.l.b16 %v174
    %v436 = vunpack.c.l.b16 %v175
    %v437 = vunpack.c.l.b16 %v176
    %v438 = vunpack.c.l.b16 %v177
    %v439 = vunpack.c.l.b16 %v178
    %v440 = vunpack.c.l.b16 %v179
    %v441 = vunpack.c.l.b16 %v180
    %v442 = vunpack.c.l.b16 %v181
    %v443 = vunpack.c.l.b16 %v182
    %v444 = vunpack.c.l.b16 %v183
    %v445 = vunpack.c.l.b16 %v184
    %v446 = vunpack.c.l.b16 %v185
    %v447 = vunpack.c.l.b16 %v186
    %v448 = vpack.c.b16 %v321, %v320
    %v449 = vpack.c.b16 %v323, %v322
    %v450 = vpack.c.b16 %v325, %v324
    %v451 = vpack.c.b16 %v327, %v326
    %v452 = vpack.c.b16 %v329, %v328
    %v453 = vpack.c.b16 %v331, %v330
    %v454 = vpack.c.b16 %v333, %v332
    %v455 = vpack.c.b16 %v335, %v334
    %v456 = vpack.c.b16 %v337, %v336
    %v457 = vpack.c.b16 %v339, %v338
    %v458 = vpack.c.b16 %v341, %v340
    %v459 = vpack.c.b16 %v343, %v342
    %v460 = vpack.c.b16 %v345, %v344
    %v461 = vpack.c.b16 %v347, %v346
    %v462 = vpack.c.b16 %v349, %v348
    %v463 = vpack.c.b16 %v351, %v350
    %v464 = vpack.c.b16 %v353, %v352
    %v465 = vpack.c.b16 %v355, %v354
    %v466 = vpack.c.b16 %v357, %v356
    %v467 = vpack.c.b16 %v359, %v358
    %v468 = vpack.c.b16 %v361, %v360
    %v469 = vpack.c.b16 %v363, %v362
    %v470 = vpack.c.b16 %v365, %v364
    %v471 = vpack.c.b16 %v367, %v366
    %v472 = vpack.c.b16 %v369, %v368
    %v473 = vpack.c.b16 %v371, %v370
    %v474 = vpack.c.b16 %v373, %v372
    %v475 = vpack.c.b16 %v375, %v374
    %v476 = vpack.c.b16 %v377, %v376
    %v477 = vpack.c.b16 %v379, %v378
    %v478 = vpack.c.b16 %v381, %v380
    %v479 = vpack.c.b16 %v383, %v382
    %v480 = vpack.c.b16 %v385, %v384
    %v481 = vpack.c.b16 %v387, %v386
    %v482 = vpack.c.b16 %v389, %v388
    %v483 = vpack.c.b16 %v391, %v390
    %v484 = vpack.c.b16 %v393, %v392
    %v485 = vpack.c.b16 %v395, %v394
    %v486 = vpack.c.b16 %v397, %v396
    %v487 = vpack.c.b16 %v399, %v398
    %v488 = vpack.c.b16 %v401, %v400
    %v489 = vpack.c.b16 %v403, %v402
    %v490 = vpack.c.b16 %v405, %v404
    %v491 = vpack.c.b16 %v407, %v406
    %v492 = vpack.c.b16 %v409, %v408
    %v493 = vpack.c.b16 %v411, %v410
    %v494 = vpack.c.b16 %v413, %v412
    %v495 = vpack.c.b16 %v415, %v414
    %v496 = vpack.c.b16 %v417, %v416
    %v497 = vpack.c.b16 %v419, %v418
    %v498 = vpack.c.b16 %v421, %v420
    %v499 = vpack.c.b16 %v423, %v422
    %v500 = vpack.c.b16 %v425, %v424
    %v501 = vpack.c.b16 %v427, %v426
    %v502 = vpack.c.b16 %v429, %v428
    %v503 = vpack.c.b16 %v431, %v430
    %v504 = vpack.c.b16 %v433, %v432
    %v505 = vpack.c.b16 %v435, %v434
    %v506 = vpack.c.b16 %v437, %v436
    %v507 = vpack.c.b16 %v439, %v438
    %v508 = vpack.c.b16 %v441, %v440
    %v509 = vpack.c.b16 %v443, %v442
    %v510 = vpack.c.b16 %v445, %v444
    %v511 = vpack.c.b16 %v447, %v446
    %576 = vmatprep.subr.bf16.mxu0 0
    %577 = vmatpush1.bf16.msra.mxu0 %v455
    %578 = vmatprep.subr.bf16.mxu0 0
    %579 = vmatpush1.bf16.msra.mxu0 %v454
    %580 = vmatprep.subr.bf16.mxu0 0
    %581 = vmatpush1.bf16.msra.mxu0 %v453
    %582 = vmatprep.subr.bf16.mxu0 0
    %583 = vmatpush1.bf16.msra.mxu0 %v452
    %584 = vmatprep.subr.bf16.mxu0 0
    %585 = vmatpush1.bf16.msra.mxu0 %v451
    %586 = vmatprep.subr.bf16.mxu0 0
    %587 = vmatpush1.bf16.msra.mxu0 %v450
    %588 = vmatprep.subr.bf16.mxu0 0
    %589 = vmatpush1.bf16.msra.mxu0 %v449
    %590 = vmatprep.subr.bf16.mxu0 0
    %591 = vmatpush1.bf16.msra.mxu0 %v448
    %592 = vmatprep.subr.bf16.mxu0 0
    %593 = vmatpush2.bf16.msra.mxu0 %v463
    %594 = vmatprep.subr.bf16.mxu0 0
    %595 = vmatpush2.bf16.msra.mxu0 %v462
    %596 = vmatprep.subr.bf16.mxu0 0
    %597 = vmatpush2.bf16.msra.mxu0 %v461
    %598 = vmatprep.subr.bf16.mxu0 0
    %599 = vmatpush2.bf16.msra.mxu0 %v460
    %600 = vmatprep.subr.bf16.mxu0 0
    %601 = vmatpush2.bf16.msra.mxu0 %v459
    %602 = vmatprep.subr.bf16.mxu0 0
    %603 = vmatpush2.bf16.msra.mxu0 %v458
    %604 = vmatprep.subr.bf16.mxu0 0
    %605 = vmatpush2.bf16.msra.mxu0 %v457
    %606 = vmatprep.subr.bf16.mxu0 0
    %607 = vmatpush2.bf16.msra.mxu0 %v456
    %608 = vmatprep.mubr.bf16.mxu0 %v44
    %609 = vmatmul.mubr.bf16.gmra.mxu0 %v43
    %v610 = vpop.f32.mrf.mxu0
    %v611 = vadd.f32 %v191, %v610
    %v612 = vpop.f32.mrf.mxu0
    %v613 = vpop.f32.mrf.mxu0
    %v614 = vadd.f32 %v191, %v613
    %v615 = vpop.f32.mrf.mxu0
    %616 = vmatprep.mubr.bf16.mxu0 %v52
    %617 = vmatmul.mubr.bf16.gmra.mxu0 %v51
    %v618 = vpop.f32.mrf.mxu0
    %v619 = vadd.f32 %v191, %v618
    %v620 = vpop.f32.mrf.mxu0
    %v621 = vpop.f32.mrf.mxu0
    %v622 = vpop.f32.mrf.mxu0
    %623 = vdwg.mxu0
    %624 = vmatprep.subr.bf16.mxu0 0
    %625 = vmatpush1.bf16.msra.mxu0 %v471
    %626 = vmatprep.subr.bf16.mxu0 0
    %627 = vmatpush1.bf16.msra.mxu0 %v470
    %628 = vmatprep.subr.bf16.mxu0 0
    %629 = vmatpush1.bf16.msra.mxu0 %v469
    %630 = vmatprep.subr.bf16.mxu0 0
    %631 = vmatpush1.bf16.msra.mxu0 %v468
    %632 = vmatprep.subr.bf16.mxu0 0
    %633 = vmatpush1.bf16.msra.mxu0 %v467
    %634 = vmatprep.subr.bf16.mxu0 0
    %635 = vmatpush1.bf16.msra.mxu0 %v466
    %636 = vmatprep.subr.bf16.mxu0 0
    %637 = vmatpush1.bf16.msra.mxu0 %v465
    %638 = vmatprep.subr.bf16.mxu0 0
    %639 = vmatpush1.bf16.msra.mxu0 %v464
    %640 = vmatprep.subr.bf16.mxu0 0
    %641 = vmatpush2.bf16.msra.mxu0 %v479
    %642 = vmatprep.subr.bf16.mxu0 0
    %643 = vmatpush2.bf16.msra.mxu0 %v478
    %644 = vmatprep.subr.bf16.mxu0 0
    %645 = vmatpush2.bf16.msra.mxu0 %v477
    %646 = vmatprep.subr.bf16.mxu0 0
    %647 = vmatpush2.bf16.msra.mxu0 %v476
    %648 = vmatprep.subr.bf16.mxu0 0
    %649 = vmatpush2.bf16.msra.mxu0 %v475
    %650 = vmatprep.subr.bf16.mxu0 0
    %651 = vmatpush2.bf16.msra.mxu0 %v474
    %652 = vmatprep.subr.bf16.mxu0 0
    %653 = vmatpush2.bf16.msra.mxu0 %v473
    %654 = vmatprep.subr.bf16.mxu0 0
    %655 = vmatpush2.bf16.msra.mxu0 %v472
    %656 = vmatprep.mubr.bf16.mxu0 %v46
    %657 = vmatmul.mubr.bf16.gmra.mxu0 %v45
    %v658 = vpop.f32.mrf.mxu0
    %v659 = vadd.f32 %v611, %v658
    %v660 = vpop.f32.mrf.mxu0
    %v661 = vpop.f32.mrf.mxu0
    %v662 = vadd.f32 %v614, %v661
    %v663 = vpop.f32.mrf.mxu0
    %664 = vmatprep.mubr.bf16.mxu0 %v54
    %665 = vmatmul.mubr.bf16.gmra.mxu0 %v53
    %v666 = vpop.f32.mrf.mxu0
    %v667 = vadd.f32 %v619, %v666
    %v668 = vpop.f32.mrf.mxu0
    %v669 = vpop.f32.mrf.mxu0
    %v670 = vpop.f32.mrf.mxu0
    %671 = vdwg.mxu0
    %672 = vmatprep.subr.bf16.mxu0 0
    %673 = vmatpush1.bf16.msra.mxu0 %v487
    %674 = vmatprep.subr.bf16.mxu0 0
    %675 = vmatpush1.bf16.msra.mxu0 %v486
    %676 = vmatprep.subr.bf16.mxu0 0
    %677 = vmatpush1.bf16.msra.mxu0 %v485
    %678 = vmatprep.subr.bf16.mxu0 0
    %679 = vmatpush1.bf16.msra.mxu0 %v484
    %680 = vmatprep.subr.bf16.mxu0 0
    %681 = vmatpush1.bf16.msra.mxu0 %v483
    %682 = vmatprep.subr.bf16.mxu0 0
    %683 = vmatpush1.bf16.msra.mxu0 %v482
    %684 = vmatprep.subr.bf16.mxu0 0
    %685 = vmatpush1.bf16.msra.mxu0 %v481
    %686 = vmatprep.subr.bf16.mxu0 0
    %687 = vmatpush1.bf16.msra.mxu0 %v480
    %688 = vmatprep.subr.bf16.mxu0 0
    %689 = vmatpush2.bf16.msra.mxu0 %v495
    %690 = vmatprep.subr.bf16.mxu0 0
    %691 = vmatpush2.bf16.msra.mxu0 %v494
    %692 = vmatprep.subr.bf16.mxu0 0
    %693 = vmatpush2.bf16.msra.mxu0 %v493
    %694 = vmatprep.subr.bf16.mxu0 0
    %695 = vmatpush2.bf16.msra.mxu0 %v492
    %696 = vmatprep.subr.bf16.mxu0 0
    %697 = vmatpush2.bf16.msra.mxu0 %v491
    %698 = vmatprep.subr.bf16.mxu0 0
    %699 = vmatpush2.bf16.msra.mxu0 %v490
    %700 = vmatprep.subr.bf16.mxu0 0
    %701 = vmatpush2.bf16.msra.mxu0 %v489
    %702 = vmatprep.subr.bf16.mxu0 0
    %703 = vmatpush2.bf16.msra.mxu0 %v488
    %704 = vmatprep.mubr.bf16.mxu0 %v48
    %705 = vmatmul.mubr.bf16.gmra.mxu0 %v47
    %v706 = vpop.f32.mrf.mxu0
    %v707 = vadd.f32 %v659, %v706
    %v708 = vpop.f32.mrf.mxu0
    %v709 = vpop.f32.mrf.mxu0
    %v710 = vadd.f32 %v662, %v709
    %v711 = vpop.f32.mrf.mxu0
    %712 = vmatprep.mubr.bf16.mxu0 %v56
    %713 = vmatmul.mubr.bf16.gmra.mxu0 %v55
    %v714 = vpop.f32.mrf.mxu0
    %v715 = vadd.f32 %v667, %v714
    %v716 = vpop.f32.mrf.mxu0
    %v717 = vpop.f32.mrf.mxu0
    %v718 = vpop.f32.mrf.mxu0
    %719 = vdwg.mxu0
    %720 = vmatprep.subr.bf16.mxu0 0
    %721 = vmatpush1.bf16.msra.mxu0 %v503
    %722 = vmatprep.subr.bf16.mxu0 0
    %723 = vmatpush1.bf16.msra.mxu0 %v502
    %724 = vmatprep.subr.bf16.mxu0 0
    %725 = vmatpush1.bf16.msra.mxu0 %v501
    %726 = vmatprep.subr.bf16.mxu0 0
    %727 = vmatpush1.bf16.msra.mxu0 %v500
    %728 = vmatprep.subr.bf16.mxu0 0
    %729 = vmatpush1.bf16.msra.mxu0 %v499
    %730 = vmatprep.subr.bf16.mxu0 0
    %731 = vmatpush1.bf16.msra.mxu0 %v498
    %732 = vmatprep.subr.bf16.mxu0 0
    %733 = vmatpush1.bf16.msra.mxu0 %v497
    %734 = vmatprep.subr.bf16.mxu0 0
    %735 = vmatpush1.bf16.msra.mxu0 %v496
    %736 = vmatprep.subr.bf16.mxu0 0
    %737 = vmatpush2.bf16.msra.mxu0 %v511
    %738 = vmatprep.subr.bf16.mxu0 0
    %739 = vmatpush2.bf16.msra.mxu0 %v510
    %740 = vmatprep.subr.bf16.mxu0 0
    %741 = vmatpush2.bf16.msra.mxu0 %v509
    %742 = vmatprep.subr.bf16.mxu0 0
    %743 = vmatpush2.bf16.msra.mxu0 %v508
    %744 = vmatprep.subr.bf16.mxu0 0
    %745 = vmatpush2.bf16.msra.mxu0 %v507
    %746 = vmatprep.subr.bf16.mxu0 0
    %747 = vmatpush2.bf16.msra.mxu0 %v506
    %748 = vmatprep.subr.bf16.mxu0 0
    %749 = vmatpush2.bf16.msra.mxu0 %v505
    %750 = vmatprep.subr.bf16.mxu0 0
    %751 = vmatpush2.bf16.msra.mxu0 %v504
    %752 = vmatprep.mubr.bf16.mxu0 %v50
    %753 = vmatmul.mubr.bf16.gmra.mxu0 %v49
    %v754 = vpop.f32.mrf.mxu0
    %v755 = vadd.f32 %v707, %v754
    %v756 = vpop.f32.mrf.mxu0
    %v757 = vpop.f32.mrf.mxu0
    %v758 = vadd.f32 %v710, %v757
    %v759 = vpop.f32.mrf.mxu0
    %760 = vmatprep.mubr.bf16.mxu0 %v58
    %761 = vmatmul.mubr.bf16.gmra.mxu0 %v57
    %v762 = vpop.f32.mrf.mxu0
    %v763 = vadd.f32 %v715, %v762
    %v764 = vpop.f32.mrf.mxu0
    %v765 = vpop.f32.mrf.mxu0
    %v766 = vpop.f32.mrf.mxu0
    %767 = vdwg.mxu0
    %v768 = vmax.f32 %v755, 0.0
    %v769 = vmax.f32 %v758, 0.0
    %v770 = vmax.f32 %v763, 0.0
    %v771 = vlaneseq
    %v772 = vshrl.u32 %v771, 7
    %v773 = vlaneseq
    %v774 = vand.u32 %v773, 127
    %v775 = vld [vmem:[%s3 + $0x48] sm:$0x1]
    %v776 = vlaneseq
    %v777 = vshrl.u32 %v776, 7
    %v778 = vsub.s32 0, %v777
    %v779 = vrot.slane %v775, %v778
    %v780 = vld [vmem:[%s1] sm:$0xf]
    %vm781 = vcmask 19456
    %v782 = vsel %vm781, %v780, 0.0
    %783 = vadd.xlane.f32.xlu0 %v782
    %v784 = vpop.xlane.xlu0 %783
    %v785 = vrcp.pop %v784
    %v786 = vmul.f32 %v780, %v785
    %vm787 = vcmp.eq.s32.totalorder %v774, %v772
    %789 = vset.pattern.permute.xlu0 0
    %790 = vperm.xlu0 %789, %v786
    %v791 = vpop.permute.xlu0 %790
    %v793 = vsel %vm787, %v791, 0.0
    %v794 = vadd.f32 %v793, 0.0
    %v795 = vadd.s32 %v772, 4
    %vm796 = vcmp.eq.s32.totalorder %v774, %v795
    %797 = vset.pattern.permute.xlu0 1
    %798 = vperm.xlu0 %797, %v786
    %v799 = vpop.permute.xlu0 %798
    %v801 = vsel %vm796, %v799, 0.0
    %v802 = vadd.f32 %v794, %v801
    %v803 = vadd.s32 %v772, 8
    %vm804 = vcmp.eq.s32.totalorder %v774, %v803
    %805 = vset.pattern.permute.xlu0 2
    %806 = vperm.xlu0 %805, %v786
    %v807 = vpop.permute.xlu0 %806
    %v809 = vsel %vm804, %v807, 0.0
    %v810 = vadd.f32 %v802, %v809
    %vm811 = vcmask 195584
    %v813 = vsel %vm811, %v810, 0
    %815 = vmatprep.subr.mxu0 0.0
    %816 = vmatpush1.msra.mxu0 0.0
    %817 = vmatprep.subr.mxu0 0.0
    %818 = vmatpush1.msra.mxu0 0.0
    %819 = vmatprep.subr.mxu0 0.0
    %820 = vmatpush1.msra.mxu0 0.0
    %821 = vmatprep.subr.mxu0 0.0
    %822 = vmatpush1.msra.mxu0 0.0
    %823 = vmatprep.subr.mxu0 0.0
    %824 = vmatpush1.msra.mxu0 0.0
    %825 = vmatprep.subr.mxu0 0.0
    %826 = vmatpush1.msra.mxu0 0.0
    %827 = vmatprep.subr.mxu0 0.0
    %828 = vmatpush1.msra.mxu0 0.0
    %829 = vmatprep.subr.mxu0 0.0
    %830 = vmatpush1.msra.mxu0 0.0
    %831 = vmatprep.subr.mxu0 0.0
    %832 = vmatpush1.msra.mxu0 0.0
    %833 = vmatprep.subr.mxu0 0.0
    %834 = vmatpush1.msra.mxu0 0.0
    %835 = vmatprep.subr.mxu0 0.0
    %836 = vmatpush1.msra.mxu0 0.0
    %837 = vmatprep.subr.mxu0 0.0
    %838 = vmatpush1.msra.mxu0 0.0
    %839 = vmatprep.subr.mxu0 0.0
    %840 = vmatpush1.msra.mxu0 0.0
    %841 = vmatprep.subr.mxu0 0.0
    %842 = vmatpush1.msra.mxu0 %v770
    %843 = vmatprep.subr.mxu0 0.0
    %844 = vmatpush1.msra.mxu0 %v769
    %845 = vmatprep.subr.mxu0 0.0
    %846 = vmatpush1.msra.mxu0 %v768
    %847 = vmatprep.subr.mxu0 0.0
    %848 = vmatpush2.msra.mxu0 0.0
    %849 = vmatprep.subr.mxu0 0.0
    %850 = vmatpush2.msra.mxu0 0.0
    %851 = vmatprep.subr.mxu0 0.0
    %852 = vmatpush2.msra.mxu0 0.0
    %853 = vmatprep.subr.mxu0 0.0
    %854 = vmatpush2.msra.mxu0 0.0
    %855 = vmatprep.subr.mxu0 0.0
    %856 = vmatpush2.msra.mxu0 0.0
    %857 = vmatprep.subr.mxu0 0.0
    %858 = vmatpush2.msra.mxu0 0.0
    %859 = vmatprep.subr.mxu0 0.0
    %860 = vmatpush2.msra.mxu0 0.0
    %861 = vmatprep.subr.mxu0 0.0
    %862 = vmatpush2.msra.mxu0 0.0
    %863 = vmatprep.subr.mxu0 0.0
    %864 = vmatpush2.msra.mxu0 0.0
    %865 = vmatprep.subr.mxu0 0.0
    %866 = vmatpush2.msra.mxu0 0.0
    %867 = vmatprep.subr.mxu0 0.0
    %868 = vmatpush2.msra.mxu0 0.0
    %869 = vmatprep.subr.mxu0 0.0
    %870 = vmatpush2.msra.mxu0 0.0
    %871 = vmatprep.subr.mxu0 0.0
    %872 = vmatpush2.msra.mxu0 0.0
    %873 = vmatprep.subr.mxu0 0.0
    %874 = vmatpush2.msra.mxu0 0.0
    %875 = vmatprep.subr.mxu0 0.0
    %876 = vmatpush2.msra.mxu0 0.0
    %877 = vmatprep.subr.mxu0 0.0
    %878 = vmatpush2.msra.mxu0 0.0
    %879 = vmatprep.mubr.f32.mxu0 0.0
    %880 = vmatmul.mubr.f32.gmra.mxu0 %v813
    %v881 = vpop.f32.mrf.mxu0
    %v882 = vadd.f32 0.0, %v881
    %v883 = vpop.f32.mrf.mxu0
    %884 = vdwg.mxu0
    %v885 = vld [vmem:[%s3 + $0x8] sm:$0xff]
    %v886 = vld [vmem:[%s3 + $0x10] sm:$0xff]
    %v887 = vld [vmem:[%s3 + $0x18] sm:$0xff]
    %v888 = vld [vmem:[%s3 + $0x20] sm:$0xff]
    %vm889 = vcmask 261120
    %v891 = vsel %vm889, %v882, 0
    %893 = vmatprep.subr.mxu0 0.0
    %894 = vmatpush1.msra.mxu0 0.0
    %895 = vmatprep.subr.mxu0 0.0
    %896 = vmatpush1.msra.mxu0 0.0
    %897 = vmatprep.subr.mxu0 0.0
    %898 = vmatpush1.msra.mxu0 0.0
    %899 = vmatprep.subr.mxu0 0.0
    %900 = vmatpush1.msra.mxu0 0.0
    %901 = vmatprep.subr.mxu0 0.0
    %902 = vmatpush1.msra.mxu0 0.0
    %903 = vmatprep.subr.mxu0 0.0
    %904 = vmatpush1.msra.mxu0 0.0
    %905 = vmatprep.subr.mxu0 0.0
    %906 = vmatpush1.msra.mxu0 0.0
    %907 = vmatprep.subr.mxu0 0.0
    %908 = vmatpush1.msra.mxu0 0.0
    %909 = vmatprep.subr.mxu0 0.0
    %910 = vmatpush1.msra.mxu0 0.0
    %911 = vmatprep.subr.mxu0 0.0
    %912 = vmatpush1.msra.mxu0 0.0
    %913 = vmatprep.subr.mxu0 0.0
    %914 = vmatpush1.msra.mxu0 0.0
    %915 = vmatprep.subr.mxu0 0.0
    %916 = vmatpush1.msra.mxu0 0.0
    %917 = vmatprep.subr.mxu0 0.0
    %918 = vmatpush1.msra.mxu0 %v888
    %919 = vmatprep.subr.mxu0 0.0
    %920 = vmatpush1.msra.mxu0 %v887
    %921 = vmatprep.subr.mxu0 0.0
    %922 = vmatpush1.msra.mxu0 %v886
    %923 = vmatprep.subr.mxu0 0.0
    %924 = vmatpush1.msra.mxu0 %v885
    %925 = vmatprep.subr.mxu0 0.0
    %926 = vmatpush2.msra.mxu0 0.0
    %927 = vmatprep.subr.mxu0 0.0
    %928 = vmatpush2.msra.mxu0 0.0
    %929 = vmatprep.subr.mxu0 0.0
    %930 = vmatpush2.msra.mxu0 0.0
    %931 = vmatprep.subr.mxu0 0.0
    %932 = vmatpush2.msra.mxu0 0.0
    %933 = vmatprep.subr.mxu0 0.0
    %934 = vmatpush2.msra.mxu0 0.0
    %935 = vmatprep.subr.mxu0 0.0
    %936 = vmatpush2.msra.mxu0 0.0
    %937 = vmatprep.subr.mxu0 0.0
    %938 = vmatpush2.msra.mxu0 0.0
    %939 = vmatprep.subr.mxu0 0.0
    %940 = vmatpush2.msra.mxu0 0.0
    %941 = vmatprep.subr.mxu0 0.0
    %942 = vmatpush2.msra.mxu0 0.0
    %943 = vmatprep.subr.mxu0 0.0
    %944 = vmatpush2.msra.mxu0 0.0
    %945 = vmatprep.subr.mxu0 0.0
    %946 = vmatpush2.msra.mxu0 0.0
    %947 = vmatprep.subr.mxu0 0.0
    %948 = vmatpush2.msra.mxu0 0.0
    %949 = vmatprep.subr.mxu0 0.0
    %950 = vmatpush2.msra.mxu0 0.0
    %951 = vmatprep.subr.mxu0 0.0
    %952 = vmatpush2.msra.mxu0 0.0
    %953 = vmatprep.subr.mxu0 0.0
    %954 = vmatpush2.msra.mxu0 0.0
    %955 = vmatprep.subr.mxu0 0.0
    %956 = vmatpush2.msra.mxu0 0.0
    %957 = vmatprep.mubr.f32.mxu0 0.0
    %958 = vmatmul.mubr.f32.gmra.mxu0 %v891
    %v959 = vpop.f32.mrf.mxu0
    %v960 = vadd.f32 0.0, %v959
    %v961 = vpop.f32.mrf.mxu0
    %962 = vdwg.mxu0
    %v963 = vadd.f32 %v779, %v960
    %s964 = scalar_lea.vmem %s1, 4
    %v965 = vld [vmem:[%s964] sm:$0xf]
    %v966 = vsel %vm781, %v965, 0.0
    %967 = vadd.xlane.f32.xlu0 %v966
    %v968 = vpop.xlane.xlu0 %967
    %v969 = vrcp.pop %v968
    %v970 = vmul.f32 %v965, %v969
    %v971 = vadd.s32 %v772, 12
    %vm972 = vcmp.eq.s32.totalorder %v774, %v971
    %974 = vset.pattern.permute.xlu0 0
    %975 = vperm.xlu0 %974, %v970
    %v976 = vpop.permute.xlu0 %975
    %v978 = vsel %vm972, %v976, 0.0
    %v979 = vadd.f32 %v978, 0.0
    %v980 = vadd.s32 %v772, 16
    %vm981 = vcmp.eq.s32.totalorder %v774, %v980
    %982 = vset.pattern.permute.xlu0 1
    %983 = vperm.xlu0 %982, %v970
    %v984 = vpop.permute.xlu0 %983
    %v986 = vsel %vm981, %v984, 0.0
    %v987 = vadd.f32 %v979, %v986
    %v988 = vadd.s32 %v772, 20
    %vm989 = vcmp.eq.s32.totalorder %v774, %v988
    %990 = vset.pattern.permute.xlu0 2
    %991 = vperm.xlu0 %990, %v970
    %v992 = vpop.permute.xlu0 %991
    %v994 = vsel %vm989, %v992, 0.0
    %v995 = vadd.f32 %v987, %v994
    %v997 = vsel %vm811, %v995, 0
    %999 = vmatprep.subr.mxu0 0.0
    %1000 = vmatpush1.msra.mxu0 0.0
    %1001 = vmatprep.subr.mxu0 0.0
    %1002 = vmatpush1.msra.mxu0 0.0
    %1003 = vmatprep.subr.mxu0 0.0
    %1004 = vmatpush1.msra.mxu0 0.0
    %1005 = vmatprep.subr.mxu0 0.0
    %1006 = vmatpush1.msra.mxu0 0.0
    %1007 = vmatprep.subr.mxu0 0.0
    %1008 = vmatpush1.msra.mxu0 0.0
    %1009 = vmatprep.subr.mxu0 0.0
    %1010 = vmatpush1.msra.mxu0 0.0
    %1011 = vmatprep.subr.mxu0 0.0
    %1012 = vmatpush1.msra.mxu0 0.0
    %1013 = vmatprep.subr.mxu0 0.0
    %1014 = vmatpush1.msra.mxu0 0.0
    %1015 = vmatprep.subr.mxu0 0.0
    %1016 = vmatpush1.msra.mxu0 0.0
    %1017 = vmatprep.subr.mxu0 0.0
    %1018 = vmatpush1.msra.mxu0 0.0
    %1019 = vmatprep.subr.mxu0 0.0
    %1020 = vmatpush1.msra.mxu0 0.0
    %1021 = vmatprep.subr.mxu0 0.0
    %1022 = vmatpush1.msra.mxu0 0.0
    %1023 = vmatprep.subr.mxu0 0.0
    %1024 = vmatpush1.msra.mxu0 0.0
    %1025 = vmatprep.subr.mxu0 0.0
    %1026 = vmatpush1.msra.mxu0 %v770
    %1027 = vmatprep.subr.mxu0 0.0
    %1028 = vmatpush1.msra.mxu0 %v769
    %1029 = vmatprep.subr.mxu0 0.0
    %1030 = vmatpush1.msra.mxu0 %v768
    %1031 = vmatprep.subr.mxu0 0.0
    %1032 = vmatpush2.msra.mxu0 0.0
    %1033 = vmatprep.subr.mxu0 0.0
    %1034 = vmatpush2.msra.mxu0 0.0
    %1035 = vmatprep.subr.mxu0 0.0
    %1036 = vmatpush2.msra.mxu0 0.0
    %1037 = vmatprep.subr.mxu0 0.0
    %1038 = vmatpush2.msra.mxu0 0.0
    %1039 = vmatprep.subr.mxu0 0.0
    %1040 = vmatpush2.msra.mxu0 0.0
    %1041 = vmatprep.subr.mxu0 0.0
    %1042 = vmatpush2.msra.mxu0 0.0
    %1043 = vmatprep.subr.mxu0 0.0
    %1044 = vmatpush2.msra.mxu0 0.0
    %1045 = vmatprep.subr.mxu0 0.0
    %1046 = vmatpush2.msra.mxu0 0.0
    %1047 = vmatprep.subr.mxu0 0.0
    %1048 = vmatpush2.msra.mxu0 0.0
    %1049 = vmatprep.subr.mxu0 0.0
    %1050 = vmatpush2.msra.mxu0 0.0
    %1051 = vmatprep.subr.mxu0 0.0
    %1052 = vmatpush2.msra.mxu0 0.0
    %1053 = vmatprep.subr.mxu0 0.0
    %1054 = vmatpush2.msra.mxu0 0.0
    %1055 = vmatprep.subr.mxu0 0.0
    %1056 = vmatpush2.msra.mxu0 0.0
    %1057 = vmatprep.subr.mxu0 0.0
    %1058 = vmatpush2.msra.mxu0 0.0
    %1059 = vmatprep.subr.mxu0 0.0
    %1060 = vmatpush2.msra.mxu0 0.0
    %1061 = vmatprep.subr.mxu0 0.0
    %1062 = vmatpush2.msra.mxu0 0.0
    %1063 = vmatprep.mubr.f32.mxu0 0.0
    %1064 = vmatmul.mubr.f32.gmra.mxu0 %v997
    %v1065 = vpop.f32.mrf.mxu0
    %v1066 = vadd.f32 0.0, %v1065
    %v1067 = vpop.f32.mrf.mxu0
    %1068 = vdwg.mxu0
    %v1069 = vld [vmem:[%s3 + $0x28] sm:$0xff]
    %v1070 = vld [vmem:[%s3 + $0x30] sm:$0xff]
    %v1071 = vld [vmem:[%s3 + $0x38] sm:$0xff]
    %v1072 = vld [vmem:[%s3 + $0x40] sm:$0xff]
    %v1074 = vsel %vm889, %v1066, 0
    %1076 = vmatprep.subr.mxu0 0.0
    %1077 = vmatpush1.msra.mxu0 0.0
    %1078 = vmatprep.subr.mxu0 0.0
    %1079 = vmatpush1.msra.mxu0 0.0
    %1080 = vmatprep.subr.mxu0 0.0
    %1081 = vmatpush1.msra.mxu0 0.0
    %1082 = vmatprep.subr.mxu0 0.0
    %1083 = vmatpush1.msra.mxu0 0.0
    %1084 = vmatprep.subr.mxu0 0.0
    %1085 = vmatpush1.msra.mxu0 0.0
    %1086 = vmatprep.subr.mxu0 0.0
    %1087 = vmatpush1.msra.mxu0 0.0
    %1088 = vmatprep.subr.mxu0 0.0
    %1089 = vmatpush1.msra.mxu0 0.0
    %1090 = vmatprep.subr.mxu0 0.0
    %1091 = vmatpush1.msra.mxu0 0.0
    %1092 = vmatprep.subr.mxu0 0.0
    %1093 = vmatpush1.msra.mxu0 0.0
    %1094 = vmatprep.subr.mxu0 0.0
    %1095 = vmatpush1.msra.mxu0 0.0
    %1096 = vmatprep.subr.mxu0 0.0
    %1097 = vmatpush1.msra.mxu0 0.0
    %1098 = vmatprep.subr.mxu0 0.0
    %1099 = vmatpush1.msra.mxu0 0.0
    %1100 = vmatprep.subr.mxu0 0.0
    %1101 = vmatpush1.msra.mxu0 %v1072
    %1102 = vmatprep.subr.mxu0 0.0
    %1103 = vmatpush1.msra.mxu0 %v1071
    %1104 = vmatprep.subr.mxu0 0.0
    %1105 = vmatpush1.msra.mxu0 %v1070
    %1106 = vmatprep.subr.mxu0 0.0
    %1107 = vmatpush1.msra.mxu0 %v1069
    %1108 = vmatprep.subr.mxu0 0.0
    %1109 = vmatpush2.msra.mxu0 0.0
    %1110 = vmatprep.subr.mxu0 0.0
    %1111 = vmatpush2.msra.mxu0 0.0
    %1112 = vmatprep.subr.mxu0 0.0
    %1113 = vmatpush2.msra.mxu0 0.0
    %1114 = vmatprep.subr.mxu0 0.0
    %1115 = vmatpush2.msra.mxu0 0.0
    %1116 = vmatprep.subr.mxu0 0.0
    %1117 = vmatpush2.msra.mxu0 0.0
    %1118 = vmatprep.subr.mxu0 0.0
    %1119 = vmatpush2.msra.mxu0 0.0
    %1120 = vmatprep.subr.mxu0 0.0
    %1121 = vmatpush2.msra.mxu0 0.0
    %1122 = vmatprep.subr.mxu0 0.0
    %1123 = vmatpush2.msra.mxu0 0.0
    %1124 = vmatprep.subr.mxu0 0.0
    %1125 = vmatpush2.msra.mxu0 0.0
    %1126 = vmatprep.subr.mxu0 0.0
    %1127 = vmatpush2.msra.mxu0 0.0
    %1128 = vmatprep.subr.mxu0 0.0
    %1129 = vmatpush2.msra.mxu0 0.0
    %1130 = vmatprep.subr.mxu0 0.0
    %1131 = vmatpush2.msra.mxu0 0.0
    %1132 = vmatprep.subr.mxu0 0.0
    %1133 = vmatpush2.msra.mxu0 0.0
    %1134 = vmatprep.subr.mxu0 0.0
    %1135 = vmatpush2.msra.mxu0 0.0
    %1136 = vmatprep.subr.mxu0 0.0
    %1137 = vmatpush2.msra.mxu0 0.0
    %1138 = vmatprep.subr.mxu0 0.0
    %1139 = vmatpush2.msra.mxu0 0.0
    %1140 = vmatprep.mubr.f32.mxu0 0.0
    %1141 = vmatmul.mubr.f32.gmra.mxu0 %v1074
    %v1142 = vpop.f32.mrf.mxu0
    %v1143 = vadd.f32 0.0, %v1142
    %v1144 = vpop.f32.mrf.mxu0
    %1145 = vdwg.mxu0
    %v1146 = vadd.f32 %v963, %v1143
    %vm1147 = vcmask 35840
    %1148 = vst.msk [vmem:[#allocation2] sm:$0xf] %vm1147, %v1146
    // Predicated region
    $region18: #{tpu_custom_call.1} parent=1 // pred_check
      _
    $region19: #{tpu_custom_call.1} parent=1 // pred_check_branch
      %1150 = sbr.rel (0) target = $region21
    $region20: #{tpu_custom_call.1} parent=1 // pred_region
      %s1152 = ssub.s32 64, 64
      %1153 = vsyncadd [#allocation3], %s1152
      %s1155 = sshll.u32 [#allocation2], 4
      %s1156 = int_to_ptr.vmem [resolvable:$true] %s1155
      %1158 = dma.vmem_to_hbm [thread:$0]  %s1156, 64, %s4, [#allocation3]
    $region21: #{tpu_custom_call.1} parent=1 // pred_fallthru
      _
    // Predicated region
    $region22: #{tpu_custom_call.1} parent=1 // pred_check
      _
    $region23: #{tpu_custom_call.1} parent=1 // pred_check_branch
      %1160 = sbr.rel (0) target = $region25
    $region24: #{tpu_custom_call.1} parent=1 // pred_region
      %1161 = dma.done [#allocation3], 64
    $region25: #{tpu_custom_call.1} parent=1 // pred_fallthru
      _
    %1162 = vsyncpa [#allocation3], 1

</llo_original>
